<compile_context>
chip_gen: v7x
topology: tpu7x:2x2x1
jax: 0.10.0
libtpu: 0.0.40
codegen_flags: <defaults>
</compile_context>

<pallas_src>
import math

import jax
import jax.numpy as jnp
from jax.experimental import pallas as pl
from jax.experimental.pallas import tpu as pltpu

LANE = 128
NGF = 64
INPUT_NC = 3
OUTPUT_NC = 3
N_BLOCKS = 6

VGG_MEAN = jnp.array([104.00698793, 116.66876762, 122.67891434], jnp.float32)


def _round_up(x, m):
    return (x + m - 1) // m * m


# ---------------------------------------------------------------------------
# Pallas kernel: direct 2-D convolution (one output row per grid step)
# ---------------------------------------------------------------------------

def _make_conv_kernel(stride, KH, KW, Wo, act, nph):
    nrow = KH * nph

    def kernel(*refs):
        row_refs = refs[:nrow]                    # KH x nph padded input rows (bf16)
        w_ref = refs[nrow]                        # (KH*KW, Cin, Coutp) bf16
        b_ref = refs[nrow + 1]                    # (1, Coutp) f32
        o_ref = refs[nrow + 2]                    # (1, 1, Wo, Coutp)

        acc = None
        for kh in range(KH):
            for kw in range(KW):
                off = kw // stride
                xs = row_refs[kh * nph + (kw % stride)][0, 0, off:off + Wo, :]
                wt = w_ref[kh * KW + kw]
                d = jnp.dot(xs, wt, preferred_element_type=jnp.float32)
                acc = d if acc is None else acc + d

        r = acc + b_ref[...]
        if act == "relu":
            r = jnp.maximum(r, 0.0)
        elif act == "tanh":
            r = jnp.tanh(r)
        o_ref[0, 0] = r.astype(o_ref.dtype)

    return kernel


def conv2d(x, cp, *, stride=1, padding=0, pad_mode="constant", act="none",
           out_dtype=jnp.bfloat16):
    """Direct NHWC conv.  x: (N,H,W,Cin); cp: prepared params
    {w:(KH*KW,Cin,Coutp) bf16, b:(1,Coutp) f32, kh, kw, cout}."""
    w, b = cp["w"], cp["b"]
    KH, KW, cout = cp["kh"], cp["kw"], cp["cout"]
    _, Cin, Coutp = w.shape
    N, H, W, xc = x.shape
    assert xc == Cin, (xc, Cin)

    if padding:
        x = jnp.pad(x, ((0, 0), (padding, padding), (padding, padding), (0, 0)),
                    mode="reflect" if pad_mode == "reflect" else "constant")
    xp = x.astype(jnp.bfloat16)
    Hp, Wp = xp.shape[1], xp.shape[2]
    Ho = (Hp - KH) // stride + 1
    Wo = (Wp - KW) // stride + 1

    # Width phases keep all in-kernel horizontal-tap slices contiguous (stride 2).
    phases = [xp] if stride == 1 else [xp[:, :, p::stride, :] for p in range(stride)]
    nph = len(phases)

    operands = []
    in_specs = []
    for kh in range(KH):
        for p in range(nph):
            operands.append(phases[p])
            in_specs.append(
                pl.BlockSpec((1, 1, phases[p].shape[2], Cin),
                             lambda n, ho, kh=kh, s=stride: (n, ho * s + kh, 0, 0)))
    operands += [w, b]
    in_specs += [
        # full (small) weight/bias with constant block index -> fetched once
        pl.BlockSpec((KH * KW, Cin, Coutp), lambda n, ho: (0, 0, 0)),
        pl.BlockSpec((1, Coutp), lambda n, ho: (0, 0)),
    ]

    flops = 2 * N * Ho * Wo * KH * KW * Cin * Coutp
    bytes_accessed = (2 * N * Ho * KH * Wp * Cin        # rows (read once per v-tap)
                      + 2 * KH * KW * Cin * Coutp       # weights (fetched once)
                      + 2 * N * Ho * Wo * Coutp)        # output

    out = pl.pallas_call(
        _make_conv_kernel(stride, KH, KW, Wo, act, nph),
        out_shape=jax.ShapeDtypeStruct((N, Ho, Wo, Coutp), out_dtype),
        grid=(N, Ho),
        in_specs=in_specs,
        out_specs=pl.BlockSpec((1, 1, Wo, Coutp), lambda n, ho: (n, ho, 0, 0)),
        compiler_params=pltpu.CompilerParams(
            dimension_semantics=("parallel", "parallel")),
        cost_estimate=pl.CostEstimate(
            flops=flops,
            transcendentals=N * Ho * Wo * Coutp if act == "tanh" else 0,
            bytes_accessed=bytes_accessed),
    )(*operands)

    if Coutp != cout:
        out = out[..., :cout]
    return out


def conv_transpose2d(x, cp, *, act="none"):
    """nn.ConvTranspose2d(k=3, stride=2, padding=1, output_padding=1) as
    zero-dilation + asymmetric pad + the stride-1 direct-conv kernel."""
    # TODO(synk): a 4-phase (sub-pixel) decomposition would avoid convolving the
    # 75%-zero dilated activation; kept simple since only two small layers use it.
    N, H, W, C = x.shape
    xd = jnp.zeros((N, 2 * H - 1, 2 * W - 1, C), x.dtype).at[:, ::2, ::2, :].set(x)
    xd = jnp.pad(xd, ((0, 0), (1, 2), (1, 2), (0, 0)))
    return conv2d(xd, cp, stride=1, padding=0, act=act)


# ---------------------------------------------------------------------------
# Pallas kernel: fused BatchNorm scale/shift (+ReLU) (+residual add)
# ---------------------------------------------------------------------------

def _make_affine_kernel(act, has_res):
    def kernel(*refs):
        if has_res:
            x_ref, r_ref, sc_ref, sh_ref, o_ref = refs
        else:
            x_ref, sc_ref, sh_ref, o_ref = refs
        y = x_ref[...].astype(jnp.float32) * sc_ref[...] + sh_ref[...]
        if has_res:
            y = y + r_ref[...].astype(jnp.float32)
        if act == "relu":
            y = jnp.maximum(y, 0.0)
        o_ref[...] = y.astype(o_ref.dtype)
    return kernel


def batchnorm_act(x, gamma, beta, *, act="none", residual=None, eps=1e-5,
                  out_dtype=jnp.bfloat16):
    """Training-mode BatchNorm2d (batch statistics, affine) + optional ReLU,
    optionally fused with the ResnetBlock residual add.  x: (N,H,W,C)."""
    N, H, W, C = x.shape
    xf = x.astype(jnp.float32)
    mean = jnp.mean(xf, axis=(0, 1, 2))
    var = jnp.var(xf, axis=(0, 1, 2))
    inv = jax.lax.rsqrt(var + eps)
    scale = (gamma * inv).reshape(1, C)
    shift = (beta - mean * gamma * inv).reshape(1, C)

    M = N * H * W
    tile_m = min(512, _round_up(M, 8))          # adaptive: no waste at 4x4 blocks
    Mp = _round_up(M, tile_m)

    def prep(t):
        t = t.reshape(M, C)
        if Mp != M:
            t = jnp.pad(t, ((0, Mp - M), (0, 0)))
        return t

    operands = [prep(x)]
    in_specs = [pl.BlockSpec((tile_m, C), lambda i: (i, 0))]
    if residual is not None:
        operands.append(prep(residual))
        in_specs.append(pl.BlockSpec((tile_m, C), lambda i: (i, 0)))
    operands += [scale, shift]
    in_specs += [pl.BlockSpec((1, C), lambda i: (0, 0)),
                 pl.BlockSpec((1, C), lambda i: (0, 0))]

    out = pl.pallas_call(
        _make_affine_kernel(act, residual is not None),
        out_shape=jax.ShapeDtypeStruct((Mp, C), out_dtype),
        grid=(Mp // tile_m,),
        in_specs=in_specs,
        out_specs=pl.BlockSpec((tile_m, C), lambda i: (i, 0)),
        compiler_params=pltpu.CompilerParams(dimension_semantics=("parallel",)),
    )(*operands)
    return out[:M].reshape(N, H, W, C)


# ---------------------------------------------------------------------------
# Pallas kernel: MaxPool2d(2, 2) - single read, row tiled
# ---------------------------------------------------------------------------

def _maxpool_kernel(x_ref, o_ref):
    v = x_ref[...]                                # (TB, 2, W2, 2, C)
    v = jnp.maximum(v[:, 0], v[:, 1])             # (TB, W2, 2, C)
    o_ref[...] = jnp.maximum(v[:, :, 0, :], v[:, :, 1, :])


def maxpool2x2(x, *, tile_rows=8):
    N, H, W, C = x.shape
    H2, W2 = H // 2, W // 2
    xr = x.reshape(N * H2, 2, W2, 2, C)           # contiguity-preserving view
    M = N * H2
    tile_rows = min(tile_rows, _round_up(M, 8))
    Mp = _round_up(M, tile_rows)
    if Mp != M:
        xr = jnp.pad(xr, ((0, Mp - M), (0, 0), (0, 0), (0, 0), (0, 0)))
    out = pl.pallas_call(
        _maxpool_kernel,
        out_shape=jax.ShapeDtypeStruct((Mp, W2, C), x.dtype),
        grid=(Mp // tile_rows,),
        in_specs=[pl.BlockSpec((tile_rows, 2, W2, 2, C),
                               lambda i: (i, 0, 0, 0, 0))],
        out_specs=pl.BlockSpec((tile_rows, W2, C), lambda i: (i, 0, 0)),
        compiler_params=pltpu.CompilerParams(dimension_semantics=("parallel",)),
    )(xr)
    return out[:M].reshape(N, H2, W2, C)


# ---------------------------------------------------------------------------
# Parameters (synthetic, deterministic; weights pre-padded/pre-cast for the MXU)
# ---------------------------------------------------------------------------

def _conv_param(key, kh, kw, cin, cout, use_bias):
    kwk, kbk = jax.random.split(key)
    std = math.sqrt(2.0 / (kh * kw * cin))
    w = jax.random.normal(kwk, (kh, kw, cin, cout), jnp.float32) * std
    coutp = _round_up(cout, LANE)                  # lane-dense output channels
    wp = jnp.zeros((kh * kw, cin, coutp), jnp.bfloat16)
    wp = wp.at[:, :, :cout].set(w.reshape(kh * kw, cin, cout).astype(jnp.bfloat16))
    bp = jnp.zeros((1, coutp), jnp.float32)
    if use_bias:
        b = jax.random.normal(kbk, (cout,), jnp.float32) * 0.01
        bp = bp.at[0, :cout].set(b)
    return {"w": wp, "b": bp, "kh": kh, "kw": kw, "cout": cout}


def _bn_param(c):
    return {"g": jnp.ones((c,), jnp.float32), "b": jnp.zeros((c,), jnp.float32)}


def init_params(key):
    keys = iter(jax.random.split(key, 64))
    p = {}
    # EdgeNet (only the layers used by ResnetGenerator's forward; biases like torch)
    p["e_c11"] = _conv_param(next(keys), 3, 3, 3, 64, True)
    p["e_c12"] = _conv_param(next(keys), 3, 3, 64, 64, True)
    p["e_c21"] = _conv_param(next(keys), 3, 3, 64, 128, True)
    p["e_c22"] = _conv_param(next(keys), 3, 3, 128, 128, True)
    p["e_c31"] = _conv_param(next(keys), 3, 3, 128, 256, True)
    p["e_c32"] = _conv_param(next(keys), 3, 3, 256, 256, True)
    p["e_c33"] = _conv_param(next(keys), 3, 3, 256, 256, True)
    p["e_s1"] = _conv_param(next(keys), 1, 1, 64, 1, True)
    p["e_s2"] = _conv_param(next(keys), 1, 1, 128, 1, True)
    p["e_s3"] = _conv_param(next(keys), 1, 1, 256, 1, True)
    # Extractor (use_bias=False because norm_layer defaults to BatchNorm2d)
    p["x1"] = _conv_param(next(keys), 7, 7, INPUT_NC, NGF, False)
    p["x1_bn"] = _bn_param(NGF)
    p["x2"] = _conv_param(next(keys), 3, 3, NGF * 2, NGF * 2, False)
    p["x2_bn"] = _bn_param(NGF * 2)
    p["x3"] = _conv_param(next(keys), 3, 3, NGF * 2, NGF * 4, False)
    p["x3_bn"] = _bn_param(NGF * 4)
    # Resnet blocks
    for i in range(N_BLOCKS):
        for j in (1, 2):
            p[f"rb{i}_{j}"] = _conv_param(next(keys), 3, 3, NGF * 4, NGF * 4, False)
            p[f"rb{i}_{j}_bn"] = _bn_param(NGF * 4)
    # Reconstructor (ConvTranspose kernels stored in their stride-1-equivalent layout)
    p["r1"] = _conv_param(next(keys), 3, 3, NGF * 4, NGF * 2, False)
    p["r1_bn"] = _bn_param(NGF * 2)
    p["r2"] = _conv_param(next(keys), 3, 3, NGF * 2, NGF, False)
    p["r2_bn"] = _bn_param(NGF)
    p["r3"] = _conv_param(next(keys), 7, 7, NGF * 2, OUTPUT_NC, True)
    return p


# ---------------------------------------------------------------------------
# Network forward (NHWC internally; matches ResnetGenerator.forward)
# ---------------------------------------------------------------------------

def edge_net_forward(x, p):
    """EdgeNet forward.  Both call sites in the generator feed it the same input,
    so the 'encoder' (VGG features) and 'decoder' (score maps) branches are
    computed once and returned together."""
    t = x.astype(jnp.float32) * 255.0 - VGG_MEAN.reshape(1, 1, 1, 3)
    v1 = conv2d(t, p["e_c11"], padding=1, act="relu")
    v1 = conv2d(v1, p["e_c12"], padding=1, act="relu")
    h = maxpool2x2(v1)
    v2 = conv2d(h, p["e_c21"], padding=1, act="relu")
    v2 = conv2d(v2, p["e_c22"], padding=1, act="relu")
    h = maxpool2x2(v2)
    v3 = conv2d(h, p["e_c31"], padding=1, act="relu")
    v3 = conv2d(v3, p["e_c32"], padding=1, act="relu")
    v3 = conv2d(v3, p["e_c33"], padding=1, act="relu")
    s1 = conv2d(v1, p["e_s1"])
    s2 = conv2d(v2, p["e_s2"])
    s3 = conv2d(v3, p["e_s3"])
    return [v1, v2, v3], [s1, s2, s3]


def extractor_forward(x, scores, p):
    def conv1(inp):
        c = conv2d(inp, p["x1"], padding=3, pad_mode="reflect")
        return batchnorm_act(c, p["x1_bn"]["g"], p["x1_bn"]["b"], act="relu")

    conv_1 = conv1(x)
    conv_1_2 = conv1(jnp.tile(scores[0], (1, 1, 1, INPUT_NC)))   # repeat(1,nc,1,1)
    h = jnp.concatenate([conv_1, conv_1_2], axis=-1)
    h = conv2d(h, p["x2"], stride=2, padding=1)
    h = batchnorm_act(h, p["x2_bn"]["g"], p["x2_bn"]["b"], act="relu")
    h = conv2d(h, p["x3"], stride=2, padding=1)
    h = batchnorm_act(h, p["x3_bn"]["g"], p["x3_bn"]["b"], act="relu")
    return h


def resnet_block(x, p, i):
    h = conv2d(x, p[f"rb{i}_1"], padding=1, pad_mode="reflect")
    h = batchnorm_act(h, p[f"rb{i}_1_bn"]["g"], p[f"rb{i}_1_bn"]["b"], act="relu")
    h = conv2d(h, p[f"rb{i}_2"], padding=1, pad_mode="reflect")
    return batchnorm_act(h, p[f"rb{i}_2_bn"]["g"], p[f"rb{i}_2_bn"]["b"],
                         act="none", residual=x)


def reconstructor_forward(x, vgg, p):
    def up(inp, name):
        c = conv_transpose2d(inp, p[name])
        bn = p[name + "_bn"]
        return batchnorm_act(c, bn["g"], bn["b"], act="relu")

    c1 = up(x, "r1")
    c1_2 = up(vgg[2], "r1")
    c2 = up(c1, "r2")
    c2_2 = up(c1_2, "r2")
    h = jnp.concatenate([c2, c2_2], axis=-1)
    return conv2d(h, p["r3"], padding=3, pad_mode="reflect", act="tanh")


def resnet_generator_forward(x_nchw, p, n_blocks=N_BLOCKS):
    """ResnetGenerator.forward: Extractor -> n ResnetBlocks -> Reconstructor,
    with the EdgeNet side branch feeding both ends."""
    x = jnp.transpose(x_nchw, (0, 2, 3, 1))            # NCHW -> NHWC
    vgg, scores = edge_net_forward(x, p)
    h = extractor_forward(x.astype(jnp.bfloat16), scores, p)
    for i in range(n_blocks):
        h = resnet_block(h, p, i)
    out = reconstructor_forward(h, vgg, p)
    return jnp.transpose(out.astype(jnp.float32), (0, 3, 1, 2))   # NHWC -> NCHW


# ---------------------------------------------------------------------------
# Main
# ---------------------------------------------------------------------------

if __name__ == "__main__":
    params = init_params(jax.random.PRNGKey(1))
    x = jax.random.uniform(jax.random.PRNGKey(0), (2, 3, 16, 16), jnp.float32)

    out = resnet_generator_forward(x, params)
    out = jax.block_until_ready(out)

    assert out.shape == (2, 3, 16, 16), out.shape
    assert bool(jnp.all(jnp.isfinite(out)))
    print("KERNEL_OK")
</pallas_src>

<mosaic_0001>
module attributes {stable_mosaic.version = 11 : i64} {
  func.func @kernel(%arg0: i32, %arg1: i32, %arg2: memref<1x1x18x3xbf16, #tpu.memory_space<vmem>>, %arg3: memref<1x1x18x3xbf16, #tpu.memory_space<vmem>>, %arg4: memref<1x1x18x3xbf16, #tpu.memory_space<vmem>>, %arg5: memref<9x3x128xbf16, #tpu.memory_space<vmem>>, %arg6: memref<1x128xf32, #tpu.memory_space<vmem>>, %arg7: memref<1x1x16x128xbf16, #tpu.memory_space<vmem>>) attributes {dimension_semantics = [#tpu.dimension_semantics<parallel>, #tpu.dimension_semantics<parallel>], iteration_bounds = array<i64: 2, 16>, scalar_prefetch = 0 : i64, scratch_operands = 0 : i64, tpu.core_type = #tpu.core_type<tc>, window_params = [{transform_indices = @transform_0, window_bounds = array<i64: 1, 1, 18, 3>}, {transform_indices = @transform_1, window_bounds = array<i64: 1, 1, 18, 3>}, {transform_indices = @transform_2, window_bounds = array<i64: 1, 1, 18, 3>}, {pipeline_mode = #tpu.pipeline_mode<synchronous>, transform_indices = @transform_3, window_bounds = array<i64: 9, 3, 128>}, {pipeline_mode = #tpu.pipeline_mode<synchronous>, transform_indices = @transform_4, window_bounds = array<i64: 1, 128>}, {transform_indices = @transform_5, window_bounds = array<i64: 1, 1, 16, 128>}]} {
    %c0 = arith.constant 0 : index
    %c0_0 = arith.constant 0 : index
    %c0_1 = arith.constant 0 : index
    %c0_2 = arith.constant 0 : index
    %0 = vector.load %arg2[%c0, %c0_0, %c0_1, %c0_2] : memref<1x1x18x3xbf16, #tpu.memory_space<vmem>>, vector<1x1x16x3xbf16>
    %1 = vector.shape_cast %0 : vector<1x1x16x3xbf16> to vector<16x3xbf16>
    %c0_3 = arith.constant 0 : index
    %c0_4 = arith.constant 0 : index
    %c0_5 = arith.constant 0 : index
    %2 = vector.load %arg5[%c0_3, %c0_4, %c0_5] : memref<9x3x128xbf16, #tpu.memory_space<vmem>>, vector<1x3x128xbf16>
    %3 = vector.shape_cast %2 : vector<1x3x128xbf16> to vector<3x128xbf16>
    %cst = arith.constant dense<0.000000e+00> : vector<16x128xf32>
    %4 = tpu.matmul %1, %3, %cst {dimension_numbers = #tpu.dot_dimension_numbers<[1], [0], [0], [1], [0, 0, 1, 1], [], []>} : vector<16x3xbf16>, vector<3x128xbf16>, vector<16x128xf32> -> vector<16x128xf32>
    %c0_6 = arith.constant 0 : index
    %c0_7 = arith.constant 0 : index
    %c1 = arith.constant 1 : index
    %c0_8 = arith.constant 0 : index
    %5 = vector.load %arg2[%c0_6, %c0_7, %c1, %c0_8] : memref<1x1x18x3xbf16, #tpu.memory_space<vmem>>, vector<1x1x16x3xbf16>
    %6 = vector.shape_cast %5 : vector<1x1x16x3xbf16> to vector<16x3xbf16>
    %c1_9 = arith.constant 1 : index
    %c0_10 = arith.constant 0 : index
    %c0_11 = arith.constant 0 : index
    %7 = vector.load %arg5[%c1_9, %c0_10, %c0_11] : memref<9x3x128xbf16, #tpu.memory_space<vmem>>, vector<1x3x128xbf16>
    %8 = vector.shape_cast %7 : vector<1x3x128xbf16> to vector<3x128xbf16>
    %cst_12 = arith.constant dense<0.000000e+00> : vector<16x128xf32>
    %9 = tpu.matmul %6, %8, %cst_12 {dimension_numbers = #tpu.dot_dimension_numbers<[1], [0], [0], [1], [0, 0, 1, 1], [], []>} : vector<16x3xbf16>, vector<3x128xbf16>, vector<16x128xf32> -> vector<16x128xf32>
    %10 = arith.addf %4, %9 : vector<16x128xf32>
    %c0_13 = arith.constant 0 : index
    %c0_14 = arith.constant 0 : index
    %c2 = arith.constant 2 : index
    %c0_15 = arith.constant 0 : index
    %11 = vector.load %arg2[%c0_13, %c0_14, %c2, %c0_15] : memref<1x1x18x3xbf16, #tpu.memory_space<vmem>>, vector<1x1x16x3xbf16>
    %12 = vector.shape_cast %11 : vector<1x1x16x3xbf16> to vector<16x3xbf16>
    %c2_16 = arith.constant 2 : index
    %c0_17 = arith.constant 0 : index
    %c0_18 = arith.constant 0 : index
    %13 = vector.load %arg5[%c2_16, %c0_17, %c0_18] : memref<9x3x128xbf16, #tpu.memory_space<vmem>>, vector<1x3x128xbf16>
    %14 = vector.shape_cast %13 : vector<1x3x128xbf16> to vector<3x128xbf16>
    %cst_19 = arith.constant dense<0.000000e+00> : vector<16x128xf32>
    %15 = tpu.matmul %12, %14, %cst_19 {dimension_numbers = #tpu.dot_dimension_numbers<[1], [0], [0], [1], [0, 0, 1, 1], [], []>} : vector<16x3xbf16>, vector<3x128xbf16>, vector<16x128xf32> -> vector<16x128xf32>
    %16 = arith.addf %10, %15 : vector<16x128xf32>
    %c0_20 = arith.constant 0 : index
    %c0_21 = arith.constant 0 : index
    %c0_22 = arith.constant 0 : index
    %c0_23 = arith.constant 0 : index
    %17 = vector.load %arg3[%c0_20, %c0_21, %c0_22, %c0_23] : memref<1x1x18x3xbf16, #tpu.memory_space<vmem>>, vector<1x1x16x3xbf16>
    %18 = vector.shape_cast %17 : vector<1x1x16x3xbf16> to vector<16x3xbf16>
    %c3 = arith.constant 3 : index
    %c0_24 = arith.constant 0 : index
    %c0_25 = arith.constant 0 : index
    %19 = vector.load %arg5[%c3, %c0_24, %c0_25] : memref<9x3x128xbf16, #tpu.memory_space<vmem>>, vector<1x3x128xbf16>
    %20 = vector.shape_cast %19 : vector<1x3x128xbf16> to vector<3x128xbf16>
    %cst_26 = arith.constant dense<0.000000e+00> : vector<16x128xf32>
    %21 = tpu.matmul %18, %20, %cst_26 {dimension_numbers = #tpu.dot_dimension_numbers<[1], [0], [0], [1], [0, 0, 1, 1], [], []>} : vector<16x3xbf16>, vector<3x128xbf16>, vector<16x128xf32> -> vector<16x128xf32>
    %22 = arith.addf %16, %21 : vector<16x128xf32>
    %c0_27 = arith.constant 0 : index
    %c0_28 = arith.constant 0 : index
    %c1_29 = arith.constant 1 : index
    %c0_30 = arith.constant 0 : index
    %23 = vector.load %arg3[%c0_27, %c0_28, %c1_29, %c0_30] : memref<1x1x18x3xbf16, #tpu.memory_space<vmem>>, vector<1x1x16x3xbf16>
    %24 = vector.shape_cast %23 : vector<1x1x16x3xbf16> to vector<16x3xbf16>
    %c4 = arith.constant 4 : index
    %c0_31 = arith.constant 0 : index
    %c0_32 = arith.constant 0 : index
    %25 = vector.load %arg5[%c4, %c0_31, %c0_32] : memref<9x3x128xbf16, #tpu.memory_space<vmem>>, vector<1x3x128xbf16>
    %26 = vector.shape_cast %25 : vector<1x3x128xbf16> to vector<3x128xbf16>
    %cst_33 = arith.constant dense<0.000000e+00> : vector<16x128xf32>
    %27 = tpu.matmul %24, %26, %cst_33 {dimension_numbers = #tpu.dot_dimension_numbers<[1], [0], [0], [1], [0, 0, 1, 1], [], []>} : vector<16x3xbf16>, vector<3x128xbf16>, vector<16x128xf32> -> vector<16x128xf32>
    %28 = arith.addf %22, %27 : vector<16x128xf32>
    %c0_34 = arith.constant 0 : index
    %c0_35 = arith.constant 0 : index
    %c2_36 = arith.constant 2 : index
    %c0_37 = arith.constant 0 : index
    %29 = vector.load %arg3[%c0_34, %c0_35, %c2_36, %c0_37] : memref<1x1x18x3xbf16, #tpu.memory_space<vmem>>, vector<1x1x16x3xbf16>
    %30 = vector.shape_cast %29 : vector<1x1x16x3xbf16> to vector<16x3xbf16>
    %c5 = arith.constant 5 : index
    %c0_38 = arith.constant 0 : index
    %c0_39 = arith.constant 0 : index
    %31 = vector.load %arg5[%c5, %c0_38, %c0_39] : memref<9x3x128xbf16, #tpu.memory_space<vmem>>, vector<1x3x128xbf16>
    %32 = vector.shape_cast %31 : vector<1x3x128xbf16> to vector<3x128xbf16>
    %cst_40 = arith.constant dense<0.000000e+00> : vector<16x128xf32>
    %33 = tpu.matmul %30, %32, %cst_40 {dimension_numbers = #tpu.dot_dimension_numbers<[1], [0], [0], [1], [0, 0, 1, 1], [], []>} : vector<16x3xbf16>, vector<3x128xbf16>, vector<16x128xf32> -> vector<16x128xf32>
    %34 = arith.addf %28, %33 : vector<16x128xf32>
    %c0_41 = arith.constant 0 : index
    %c0_42 = arith.constant 0 : index
    %c0_43 = arith.constant 0 : index
    %c0_44 = arith.constant 0 : index
    %35 = vector.load %arg4[%c0_41, %c0_42, %c0_43, %c0_44] : memref<1x1x18x3xbf16, #tpu.memory_space<vmem>>, vector<1x1x16x3xbf16>
    %36 = vector.shape_cast %35 : vector<1x1x16x3xbf16> to vector<16x3xbf16>
    %c6 = arith.constant 6 : index
    %c0_45 = arith.constant 0 : index
    %c0_46 = arith.constant 0 : index
    %37 = vector.load %arg5[%c6, %c0_45, %c0_46] : memref<9x3x128xbf16, #tpu.memory_space<vmem>>, vector<1x3x128xbf16>
    %38 = vector.shape_cast %37 : vector<1x3x128xbf16> to vector<3x128xbf16>
    %cst_47 = arith.constant dense<0.000000e+00> : vector<16x128xf32>
    %39 = tpu.matmul %36, %38, %cst_47 {dimension_numbers = #tpu.dot_dimension_numbers<[1], [0], [0], [1], [0, 0, 1, 1], [], []>} : vector<16x3xbf16>, vector<3x128xbf16>, vector<16x128xf32> -> vector<16x128xf32>
    %40 = arith.addf %34, %39 : vector<16x128xf32>
    %c0_48 = arith.constant 0 : index
    %c0_49 = arith.constant 0 : index
    %c1_50 = arith.constant 1 : index
    %c0_51 = arith.constant 0 : index
    %41 = vector.load %arg4[%c0_48, %c0_49, %c1_50, %c0_51] : memref<1x1x18x3xbf16, #tpu.memory_space<vmem>>, vector<1x1x16x3xbf16>
    %42 = vector.shape_cast %41 : vector<1x1x16x3xbf16> to vector<16x3xbf16>
    %c7 = arith.constant 7 : index
    %c0_52 = arith.constant 0 : index
    %c0_53 = arith.constant 0 : index
    %43 = vector.load %arg5[%c7, %c0_52, %c0_53] : memref<9x3x128xbf16, #tpu.memory_space<vmem>>, vector<1x3x128xbf16>
    %44 = vector.shape_cast %43 : vector<1x3x128xbf16> to vector<3x128xbf16>
    %cst_54 = arith.constant dense<0.000000e+00> : vector<16x128xf32>
    %45 = tpu.matmul %42, %44, %cst_54 {dimension_numbers = #tpu.dot_dimension_numbers<[1], [0], [0], [1], [0, 0, 1, 1], [], []>} : vector<16x3xbf16>, vector<3x128xbf16>, vector<16x128xf32> -> vector<16x128xf32>
    %46 = arith.addf %40, %45 : vector<16x128xf32>
    %c0_55 = arith.constant 0 : index
    %c0_56 = arith.constant 0 : index
    %c2_57 = arith.constant 2 : index
    %c0_58 = arith.constant 0 : index
    %47 = vector.load %arg4[%c0_55, %c0_56, %c2_57, %c0_58] : memref<1x1x18x3xbf16, #tpu.memory_space<vmem>>, vector<1x1x16x3xbf16>
    %48 = vector.shape_cast %47 : vector<1x1x16x3xbf16> to vector<16x3xbf16>
    %c8 = arith.constant 8 : index
    %c0_59 = arith.constant 0 : index
    %c0_60 = arith.constant 0 : index
    %49 = vector.load %arg5[%c8, %c0_59, %c0_60] : memref<9x3x128xbf16, #tpu.memory_space<vmem>>, vector<1x3x128xbf16>
    %50 = vector.shape_cast %49 : vector<1x3x128xbf16> to vector<3x128xbf16>
    %cst_61 = arith.constant dense<0.000000e+00> : vector<16x128xf32>
    %51 = tpu.matmul %48, %50, %cst_61 {dimension_numbers = #tpu.dot_dimension_numbers<[1], [0], [0], [1], [0, 0, 1, 1], [], []>} : vector<16x3xbf16>, vector<3x128xbf16>, vector<16x128xf32> -> vector<16x128xf32>
    %52 = arith.addf %46, %51 : vector<16x128xf32>
    %c0_62 = arith.constant 0 : index
    %c0_63 = arith.constant 0 : index
    %53 = vector.load %arg6[%c0_62, %c0_63] : memref<1x128xf32, #tpu.memory_space<vmem>>, vector<1x128xf32>
    %54 = vector.broadcast %53 : vector<1x128xf32> to vector<16x128xf32>
    %55 = arith.addf %52, %54 : vector<16x128xf32>
    %cst_64 = arith.constant 0.000000e+00 : f32
    %56 = vector.broadcast %cst_64 : f32 to vector<16x128xf32>
    %57 = arith.maximumf %55, %56 : vector<16x128xf32>
    %58 = arith.truncf %57 : vector<16x128xf32> to vector<16x128xbf16>
    %c0_65 = arith.constant 0 : index
    %c0_66 = arith.constant 0 : index
    %c0_67 = arith.constant 0 : index
    %c0_68 = arith.constant 0 : index
    %59 = vector.load %arg7[%c0_65, %c0_66, %c0_67, %c0_68] : memref<1x1x16x128xbf16, #tpu.memory_space<vmem>>, vector<1x1x16x128xbf16>
    %60 = vector.shape_cast %59 : vector<1x1x16x128xbf16> to vector<16x128xbf16>
    %61 = vector.shape_cast %58 : vector<16x128xbf16> to vector<1x1x16x128xbf16>
    tpu.vector_store %arg7[%c0_65, %c0_66, %c0_67, %c0_68], %61 {strides = array<i32>} : memref<1x1x16x128xbf16, #tpu.memory_space<vmem>>, vector<1x1x16x128xbf16>,
    return
  }
  func.func @transform_0(%arg0: i32, %arg1: i32) -> (i32, i32, i32, i32) {
    %c1_i32 = arith.constant 1 : i32
    %0 = arith.muli %arg1, %c1_i32 : i32
    %c0_i32 = arith.constant 0 : i32
    %1 = arith.addi %0, %c0_i32 : i32
    %c0_i32_0 = arith.constant 0 : i32
    %c0_i32_1 = arith.constant 0 : i32
    %c0_i32_2 = arith.constant 0 : i32
    return %arg0, %1, %c0_i32_0, %c0_i32_1 : i32, i32, i32, i32
  }
  func.func @transform_1(%arg0: i32, %arg1: i32) -> (i32, i32, i32, i32) {
    %c1_i32 = arith.constant 1 : i32
    %0 = arith.muli %arg1, %c1_i32 : i32
    %c1_i32_0 = arith.constant 1 : i32
    %1 = arith.addi %0, %c1_i32_0 : i32
    %c0_i32 = arith.constant 0 : i32
    %c0_i32_1 = arith.constant 0 : i32
    %c0_i32_2 = arith.constant 0 : i32
    return %arg0, %1, %c0_i32, %c0_i32_1 : i32, i32, i32, i32
  }
  func.func @transform_2(%arg0: i32, %arg1: i32) -> (i32, i32, i32, i32) {
    %c1_i32 = arith.constant 1 : i32
    %0 = arith.muli %arg1, %c1_i32 : i32
    %c2_i32 = arith.constant 2 : i32
    %1 = arith.addi %0, %c2_i32 : i32
    %c0_i32 = arith.constant 0 : i32
    %c0_i32_0 = arith.constant 0 : i32
    %c0_i32_1 = arith.constant 0 : i32
    return %arg0, %1, %c0_i32, %c0_i32_0 : i32, i32, i32, i32
  }
  func.func @transform_3(%arg0: i32, %arg1: i32) -> (i32, i32, i32) {
    %c0_i32 = arith.constant 0 : i32
    %c0_i32_0 = arith.constant 0 : i32
    %c0_i32_1 = arith.constant 0 : i32
    %c0_i32_2 = arith.constant 0 : i32
    return %c0_i32, %c0_i32_0, %c0_i32_1 : i32, i32, i32
  }
  func.func @transform_4(%arg0: i32, %arg1: i32) -> (i32, i32) {
    %c0_i32 = arith.constant 0 : i32
    %c0_i32_0 = arith.constant 0 : i32
    %c0_i32_1 = arith.constant 0 : i32
    return %c0_i32, %c0_i32_0 : i32, i32
  }
  func.func @transform_5(%arg0: i32, %arg1: i32) -> (i32, i32, i32, i32) {
    %c0_i32 = arith.constant 0 : i32
    %c0_i32_0 = arith.constant 0 : i32
    %c0_i32_1 = arith.constant 0 : i32
    return %arg0, %arg1, %c0_i32, %c0_i32_0 : i32, i32, i32, i32
  }
}

</mosaic_0001>

<llo_original>
// kernel: tpu_custom_call.1
$region0: #{tpu_custom_call.1}
  #allocation0 [shape = 'u32[]', space=smem, size = 0x4, offset = 0x4, fixed_abs, tag = 'smem constant byte address 0x4 - core index']
  #allocation1 [shape = 'u32[144,128]{1,0:T(1,128)}', space=vmem, size = 0x12000, scoped, tag = 'internal scratch']
  %s0 = inlined_call_operand.vmem [shape: bf16[2,18,18,3], index: 0, kind: input, shape index: {}]
  %s1 = inlined_call_operand.vmem [shape: bf16[2,18,18,3], index: 1, kind: input, shape index: {}]
  %s2 = inlined_call_operand.vmem [shape: bf16[2,18,18,3], index: 2, kind: input, shape index: {}]
  %s3 = inlined_call_operand.vmem [shape: bf16[9,3,128], index: 3, kind: input, shape index: {}]
  %s4 = inlined_call_operand.vmem [shape: f32[1,128], index: 4, kind: input, shape index: {}]
  %s5 = inlined_call_operand.hbm [shape: bf16[2,16,16,128], index: 5, kind: output, shape index: {}]
  %s6 = sld [smem:[#allocation0]]
  $region53: #{tpu_custom_call.1} parent=0
    _
  %s8 = ssub.s32 1, %s6
  %s9 = scalar_select 0, %s8, %s6
  $region1: #{tpu_custom_call.1} parent=0
    #allocation2 [shape = 'u8[8192]{0}', space=vmem, size = 0x2000, scoped, tag = 'output window, operand 0']
    #allocation3 [shape = 's32[2]{0}', space=sflag, size = 0x8, scoped, tag = 'scoped memory for tpu_custom_call.1']
    %10 = vsyncpa [#allocation3], 0
    %s11 = scalar_lea.sflag [#allocation3], 1
    %12 = vsyncpa %s11, 0
    loop: start=0, step=1, limit=34
    $region2: #{tpu_custom_call.1} parent=1 // loop_pre_header
      _
    $region3: #{tpu_custom_call.1} parent=1 // loop_header
      %s14 = sphi 0, %s18
      %p15 = scmp.ge.s32.totalorder %s14, 34
      %s21 = sphi 0, %s33
      %s22 = sphi 0, %s29
      %s23 = sphi 0, %s21
      %s24 = sphi 0, %s22
      %s25 = sphi 0, %s23
      %s26 = sphi 0, %s24
      %s38 = sphi 0, %s40
      %s41 = sphi 0, %s38
      %s42 = sphi 0, %s41
      %s58 = sphi 0, %s42
      %s68 = sphi 0, %s70
      %s71 = sphi 0, %s68
      %s72 = sphi 0, %s71
      %s88 = sphi 0, %s72
      %s98 = sphi 0, %s100
      %s101 = sphi 0, %s98
      %s102 = sphi 0, %s101
      %s118 = sphi 0, %s102
      %s122 = sphi 0, %s122
      %s124 = sphi 0, %s122
      %s125 = sphi 0, %s124
      %s139 = sphi 0, %s125
      %s143 = sphi 0, %s143
      %s145 = sphi 0, %s143
      %s146 = sphi 0, %s145
      %s160 = sphi 0, %s146
      %s168 = sphi 0, %s170
      %s171 = sphi 0, %s168
      %s172 = sphi 0, %s171
      %s188 = sphi 0, %s172
    $region4: #{tpu_custom_call.1} parent=1 // loop_header_branch
      %17 = sbr.rel (%p15) target = $region8
    $region5: #{tpu_custom_call.1} parent=1 // loop_body
      %s19 = ssub.s32 %s14, 1
      %s20 = ssub.s32 %s14, 2
      %s27 = sadd.s32 1, %s22
      %p28 = scmp.ge.s32.totalorder %s27, 16
      %s29 = scalar_select %p28, 0, %s27
      %s30 = sadd.s32 1, %s21
      %s31 = scalar_select %p28, %s30, %s21
      %p32 = scmp.ge.s32.totalorder %s31, 2
      %s33 = scalar_select %p32, 0, %s31
      %s34 = ssub.s32 %s21, %s33
      %s35 = ssub.s32 %s22, %s29
      %s36 = sor.u32 %s34, %s35
      %p37 = scmp.eq.s32.totalorder %s36, 0
      %s39 = sadd.s32 %s38, 1
      %s40 = scalar_select %p37, %s38, %s39
      %p43 = pneg %p37
      %p44 = scmp.eq.s32.totalorder %s14, 31
      %p45 = por %p43, %p44
      %p46 = scmp.ne.s32.totalorder %s38, %s41
      %p47 = scmp.eq.s32.totalorder %s14, 0
      %p48 = por %p46, %p47
      %p49 = scmp.ne.s32.totalorder %s38, %s41
      %p50 = scmp.eq.s32.totalorder %s19, 31
      %p51 = por %p49, %p50
      %p52 = scmp.ne.s32.totalorder %s41, %s42
      %p53 = scmp.eq.s32.totalorder %s19, 0
      %p54 = por %p52, %p53
      %p55 = scmp.ne.s32.totalorder %s41, %s42
      %p56 = scmp.eq.s32.totalorder %s20, 31
      %p57 = por %p55, %p56
      %p59 = scmp.ne.s32.totalorder %s42, %s58
      %p60 = scmp.eq.s32.totalorder %s20, 0
      %p61 = por %p59, %p60
      %s62 = sadd.s32 %s22, 1
      %s63 = sadd.s32 %s29, 1
      %s64 = ssub.s32 %s21, %s33
      %s65 = ssub.s32 %s62, %s63
      %s66 = sor.u32 %s64, %s65
      %p67 = scmp.eq.s32.totalorder %s66, 0
      %s69 = sadd.s32 %s68, 1
      %s70 = scalar_select %p67, %s68, %s69
      %p73 = pneg %p67
      %p74 = scmp.eq.s32.totalorder %s14, 31
      %p75 = por %p73, %p74
      %p76 = scmp.ne.s32.totalorder %s68, %s71
      %p77 = scmp.eq.s32.totalorder %s14, 0
      %p78 = por %p76, %p77
      %p79 = scmp.ne.s32.totalorder %s68, %s71
      %p80 = scmp.eq.s32.totalorder %s19, 31
      %p81 = por %p79, %p80
      %p82 = scmp.ne.s32.totalorder %s71, %s72
      %p83 = scmp.eq.s32.totalorder %s19, 0
      %p84 = por %p82, %p83
      %p85 = scmp.ne.s32.totalorder %s71, %s72
      %p86 = scmp.eq.s32.totalorder %s20, 31
      %p87 = por %p85, %p86
      %p89 = scmp.ne.s32.totalorder %s72, %s88
      %p90 = scmp.eq.s32.totalorder %s20, 0
      %p91 = por %p89, %p90
      %s92 = sadd.s32 %s22, 2
      %s93 = sadd.s32 %s29, 2
      %s94 = ssub.s32 %s21, %s33
      %s95 = ssub.s32 %s92, %s93
      %s96 = sor.u32 %s94, %s95
      %p97 = scmp.eq.s32.totalorder %s96, 0
      %s99 = sadd.s32 %s98, 1
      %s100 = scalar_select %p97, %s98, %s99
      %p103 = pneg %p97
      %p104 = scmp.eq.s32.totalorder %s14, 31
      %p105 = por %p103, %p104
      %p106 = scmp.ne.s32.totalorder %s98, %s101
      %p107 = scmp.eq.s32.totalorder %s14, 0
      %p108 = por %p106, %p107
      %p109 = scmp.ne.s32.totalorder %s98, %s101
      %p110 = scmp.eq.s32.totalorder %s19, 31
      %p111 = por %p109, %p110
      %p112 = scmp.ne.s32.totalorder %s101, %s102
      %p113 = scmp.eq.s32.totalorder %s19, 0
      %p114 = por %p112, %p113
      %p115 = scmp.ne.s32.totalorder %s101, %s102
      %p116 = scmp.eq.s32.totalorder %s20, 31
      %p117 = por %p115, %p116
      %p119 = scmp.ne.s32.totalorder %s102, %s118
      %p120 = scmp.eq.s32.totalorder %s20, 0
      %p121 = por %p119, %p120
      %s123 = sadd.s32 %s122, 1
      %p126 = scmp.eq.s32.totalorder %s14, 31
      %p127 = scmp.ne.s32.totalorder %s122, %s124
      %p128 = scmp.eq.s32.totalorder %s14, 0
      %p129 = por %p127, %p128
      %p130 = scmp.ne.s32.totalorder %s122, %s124
      %p131 = scmp.eq.s32.totalorder %s19, 31
      %p132 = por %p130, %p131
      %p133 = scmp.ne.s32.totalorder %s124, %s125
      %p134 = scmp.eq.s32.totalorder %s19, 0
      %p135 = por %p133, %p134
      %p136 = scmp.ne.s32.totalorder %s124, %s125
      %p137 = scmp.eq.s32.totalorder %s20, 31
      %p138 = por %p136, %p137
      %p140 = scmp.ne.s32.totalorder %s125, %s139
      %p141 = scmp.eq.s32.totalorder %s20, 0
      %p142 = por %p140, %p141
      %s144 = sadd.s32 %s143, 1
      %p147 = scmp.eq.s32.totalorder %s14, 31
      %p148 = scmp.ne.s32.totalorder %s143, %s145
      %p149 = scmp.eq.s32.totalorder %s14, 0
      %p150 = por %p148, %p149
      %p151 = scmp.ne.s32.totalorder %s143, %s145
      %p152 = scmp.eq.s32.totalorder %s19, 31
      %p153 = por %p151, %p152
      %p154 = scmp.ne.s32.totalorder %s145, %s146
      %p155 = scmp.eq.s32.totalorder %s19, 0
      %p156 = por %p154, %p155
      %p157 = scmp.ne.s32.totalorder %s145, %s146
      %p158 = scmp.eq.s32.totalorder %s20, 31
      %p159 = por %p157, %p158
      %p161 = scmp.ne.s32.totalorder %s146, %s160
      %p162 = scmp.eq.s32.totalorder %s20, 0
      %p163 = por %p161, %p162
      %s164 = ssub.s32 %s21, %s33
      %s165 = ssub.s32 %s22, %s29
      %s166 = sor.u32 %s164, %s165
      %p167 = scmp.eq.s32.totalorder %s166, 0
      %s169 = sadd.s32 %s168, 1
      %s170 = scalar_select %p167, %s168, %s169
      %p173 = pneg %p167
      %p174 = scmp.eq.s32.totalorder %s14, 31
      %p175 = por %p173, %p174
      %p176 = scmp.ne.s32.totalorder %s168, %s171
      %p177 = scmp.eq.s32.totalorder %s14, 0
      %p178 = por %p176, %p177
      %p179 = scmp.ne.s32.totalorder %s168, %s171
      %p180 = scmp.eq.s32.totalorder %s19, 31
      %p181 = por %p179, %p180
      %p182 = scmp.ne.s32.totalorder %s171, %s172
      %p183 = scmp.eq.s32.totalorder %s19, 0
      %p184 = por %p182, %p183
      %p185 = scmp.ne.s32.totalorder %s171, %s172
      %p186 = scmp.eq.s32.totalorder %s20, 31
      %p187 = por %p185, %p186
      %p189 = scmp.ne.s32.totalorder %s172, %s188
      %p190 = scmp.eq.s32.totalorder %s20, 0
      %p191 = por %p189, %p190
      %p192 = scmp.le.s32.totalorder 1, %s14
      %p193 = scmp.lt.s32.totalorder %s14, 33
      %p194 = pnand %p192, %p193
      %p195 = pneg %p194
      // Predicated region
      $region9: #{tpu_custom_call.1} parent=5 // pred_check
        _
      $region10: #{tpu_custom_call.1} parent=5 // pred_check_branch
        %197 = sbr.rel (%p194) target = $region12
      $region11: #{tpu_custom_call.1} parent=5 // pred_region
        %s198 = ssub.s32 %s14, 1
        // Predicated region
        $region13: #{tpu_custom_call.1} parent=11 // pred_check
          %p199 = pneg %p135
        $region14: #{tpu_custom_call.1} parent=11 // pred_check_branch
          %201 = sbr.rel (%p199) target = $region16
        $region15: #{tpu_custom_call.1} parent=11 // pred_region
          _
        $region16: #{tpu_custom_call.1} parent=11 // pred_fallthru
          _
        // Predicated region
        $region17: #{tpu_custom_call.1} parent=11 // pred_check
          %p202 = pneg %p156
        $region18: #{tpu_custom_call.1} parent=11 // pred_check_branch
          %204 = sbr.rel (%p202) target = $region20
        $region19: #{tpu_custom_call.1} parent=11 // pred_region
          _
        $region20: #{tpu_custom_call.1} parent=11 // pred_fallthru
          _
      $region12: #{tpu_custom_call.1} parent=5 // pred_fallthru
        _
      %p205 = scmp.lt.s32.totalorder %s14, 32
      // Predicated region
      $region21: #{tpu_custom_call.1} parent=5 // pred_check
        %p206 = pneg %p205
      $region22: #{tpu_custom_call.1} parent=5 // pred_check_branch
        %208 = sbr.rel (%p206) target = $region24
      $region23: #{tpu_custom_call.1} parent=5 // pred_region
        // Predicated region
        $region25: #{tpu_custom_call.1} parent=23 // pred_check
          %p209 = pneg %p48
        $region26: #{tpu_custom_call.1} parent=23 // pred_check_branch
          %211 = sbr.rel (%p209) target = $region28
        $region27: #{tpu_custom_call.1} parent=23 // pred_region
          %p212 = scmp.lt.s32.totalorder %s21, 1
          %s213 = scalar_select %p212, %s21, 1
          %p214 = scmp.lt.s32.totalorder %s22, 17
          %s215 = scalar_select %p214, %s22, 17
          %s216 = smul.addr %s215, 3
          %s217 = smul.addr %s213, 54
          %s218 = sadd.s32 %s216, %s217
          %s219 = smul.addr %s218, 4
          %s220 = scalar_lea.vmem %s0, %s219
        $region28: #{tpu_custom_call.1} parent=23 // pred_fallthru
          _
        // Predicated region
        $region29: #{tpu_custom_call.1} parent=23 // pred_check
          %p221 = pneg %p78
        $region30: #{tpu_custom_call.1} parent=23 // pred_check_branch
          %223 = sbr.rel (%p221) target = $region32
        $region31: #{tpu_custom_call.1} parent=23 // pred_region
          %s224 = sadd.s32 %s22, 1
          %p225 = scmp.lt.s32.totalorder %s21, 1
          %s226 = scalar_select %p225, %s21, 1
          %p227 = scmp.lt.s32.totalorder %s224, 17
          %s228 = scalar_select %p227, %s224, 17
          %s229 = smul.addr %s228, 3
          %s230 = smul.addr %s226, 54
          %s231 = sadd.s32 %s229, %s230
          %s232 = smul.addr %s231, 4
          %s233 = scalar_lea.vmem %s1, %s232
          %s234 = sadd.s32 %s22, 1
        $region32: #{tpu_custom_call.1} parent=23 // pred_fallthru
          _
        // Predicated region
        $region33: #{tpu_custom_call.1} parent=23 // pred_check
          %p235 = pneg %p108
        $region34: #{tpu_custom_call.1} parent=23 // pred_check_branch
          %237 = sbr.rel (%p235) target = $region36
        $region35: #{tpu_custom_call.1} parent=23 // pred_region
          %s238 = sadd.s32 %s22, 2
          %p239 = scmp.lt.s32.totalorder %s21, 1
          %s240 = scalar_select %p239, %s21, 1
          %p241 = scmp.lt.s32.totalorder %s238, 17
          %s242 = scalar_select %p241, %s238, 17
          %s243 = smul.addr %s242, 3
          %s244 = smul.addr %s240, 54
          %s245 = sadd.s32 %s243, %s244
          %s246 = smul.addr %s245, 4
          %s247 = scalar_lea.vmem %s2, %s246
          %s248 = sadd.s32 %s22, 2
        $region36: #{tpu_custom_call.1} parent=23 // pred_fallthru
          _
      $region24: #{tpu_custom_call.1} parent=5 // pred_fallthru
        _
      %p249 = scmp.le.s32.totalorder 1, %s14
      %p250 = scmp.lt.s32.totalorder %s14, 33
      %p251 = pnand %p249, %p250
      %p252 = pneg %p251
      // Predicated region
      $region37: #{tpu_custom_call.1} parent=5 // pred_check
        _
      $region38: #{tpu_custom_call.1} parent=5 // pred_check_branch
        %254 = sbr.rel (%p251) target = $region40
      $region39: #{tpu_custom_call.1} parent=5 // pred_region
        %s255 = ssub.s32 %s14, 1
        %p256 = scmp.lt.s32.totalorder %s23, 1
        %s257 = scalar_select %p256, %s23, 1
        %p258 = scmp.lt.s32.totalorder %s24, 17
        %s259 = scalar_select %p258, %s24, 17
        %s260 = smul.addr %s259, 3
        %s261 = smul.addr %s257, 54
        %s262 = sadd.s32 %s260, %s261
        %s263 = smul.addr %s262, 4
        %s264 = scalar_lea.vmem %s0, %s263
        %p265 = pneg %p54
        %p266 = pneg %p51
        %s267 = sadd.s32 %s24, 1
        %p268 = scmp.lt.s32.totalorder %s23, 1
        %s269 = scalar_select %p268, %s23, 1
        %p270 = scmp.lt.s32.totalorder %s267, 17
        %s271 = scalar_select %p270, %s267, 17
        %s272 = smul.addr %s271, 3
        %s273 = smul.addr %s269, 54
        %s274 = sadd.s32 %s272, %s273
        %s275 = smul.addr %s274, 4
        %s276 = scalar_lea.vmem %s1, %s275
        %p277 = pneg %p84
        %p278 = pneg %p81
        %s279 = sadd.s32 %s24, 2
        %p280 = scmp.lt.s32.totalorder %s23, 1
        %s281 = scalar_select %p280, %s23, 1
        %p282 = scmp.lt.s32.totalorder %s279, 17
        %s283 = scalar_select %p282, %s279, 17
        %s284 = smul.addr %s283, 3
        %s285 = smul.addr %s281, 54
        %s286 = sadd.s32 %s284, %s285
        %s287 = smul.addr %s286, 4
        %s288 = scalar_lea.vmem %s2, %s287
        %p289 = pneg %p114
        %p290 = pneg %p111
        %p291 = pneg %p135
        %p292 = pneg %p132
        %p293 = pneg %p156
        %p294 = pneg %p153
        %p295 = pneg %p184
        %p296 = pneg %p181
        %s297 = sand.u32 %s171, 1
        %s298 = scalar_lea.sflag [#allocation3], %s297
        %s299 = sand.u32 %s171, 1
        %s300 = smul.addr %s299, 8
        %s301 = scalar_lea.vmem [#allocation2], %s300
        %p302 = scmp.lt.s32.totalorder %s23, 1
        %s303 = scalar_select %p302, %s23, 1
        %p304 = scmp.lt.s32.totalorder %s24, 17
        %s305 = scalar_select %p304, %s24, 17
        %s306 = smul.addr %s305, 3
        %s307 = smul.addr %s303, 54
        %s308 = sadd.s32 %s306, %s307
        %s309 = smul.addr %s308, 4
        %s310 = scalar_lea.vmem %s0, %s309
        %s311 = sadd.s32 %s24, 1
        %p312 = scmp.lt.s32.totalorder %s23, 1
        %s313 = scalar_select %p312, %s23, 1
        %p314 = scmp.lt.s32.totalorder %s311, 17
        %s315 = scalar_select %p314, %s311, 17
        %s316 = smul.addr %s315, 3
        %s317 = smul.addr %s313, 54
        %s318 = sadd.s32 %s316, %s317
        %s319 = smul.addr %s318, 4
        %s320 = scalar_lea.vmem %s1, %s319
        %s321 = sadd.s32 %s24, 1
        %s322 = sadd.s32 %s24, 2
        %p323 = scmp.lt.s32.totalorder %s23, 1
        %s324 = scalar_select %p323, %s23, 1
        %p325 = scmp.lt.s32.totalorder %s322, 17
        %s326 = scalar_select %p325, %s322, 17
        %s327 = smul.addr %s326, 3
        %s328 = smul.addr %s324, 54
        %s329 = sadd.s32 %s327, %s328
        %s330 = smul.addr %s329, 4
        %s331 = scalar_lea.vmem %s2, %s330
        %s332 = sadd.s32 %s24, 2
        %v334 = vld [vmem:[%s310] sm:$0xf]
        %v335 = vld [vmem:[%s310 + $0x4] sm:$0xf]
        %v336 = vld [vmem:[%s3] sm:$0x3]
        %v337 = vld [vmem:[%s310 + $0x8] sm:$0x1]
        %s338 = scalar_lea.vmem %s3, 2
        %v339 = vld [vmem:[%s338] sm:$0x3]
        %v343 = vunpack.c.l.b16 %v334
        %v344 = vunpack.c.l.b16 %v335
        %v345 = vunpack.c.l.b16 %v337
        %v346 = vpack.c.b16 %v344, %v343
        %v347 = vpack.c.b16 %v345, %v345
        %vm348 = vsmask.f32 7424
        %v350 = vshrl.u32 %v346, 16
        %v352 = vshll.u32 %v346, 16
        %v354 = vrot.slane %v352, 1
        %v355 = vor.u32 %v350, %v354
        %v357 = vshll.u32 %v347, 16
        %v359 = vrot.slane %v357, 1
        %v360 = vsel %vm348, %v355, %v359
        %vm361 = vcmask 23552
        %v363 = vsel %vm361, %v360, 0
        %vm365 = vcmask 1040384
        %vm366 = vcmask 1041408
        %v367 = vsel %vm365, 4294967295, 65535
        %v368 = vsel %vm366, %v367, 0
        %v370 = vand.u32 %v339, %v368
        %372 = vmatprep.subr.bf16.mxu0 0
        %373 = vmatpush1.bf16.msra.mxu0 %v370
        %374 = vmatprep.subr.bf16.mxu0 0
        %375 = vmatpush1.bf16.msra.mxu0 0
        %376 = vmatprep.subr.bf16.mxu0 0
        %377 = vmatpush1.bf16.msra.mxu0 0
        %378 = vmatprep.subr.bf16.mxu0 0
        %379 = vmatpush1.bf16.msra.mxu0 0
        %380 = vmatprep.subr.bf16.mxu0 0
        %381 = vmatpush1.bf16.msra.mxu0 0
        %382 = vmatprep.subr.bf16.mxu0 0
        %383 = vmatpush1.bf16.msra.mxu0 0
        %384 = vmatprep.subr.bf16.mxu0 0
        %385 = vmatpush1.bf16.msra.mxu0 0
        %386 = vmatprep.subr.bf16.mxu0 0
        %387 = vmatpush1.bf16.msra.mxu0 0
        %388 = vmatprep.subr.bf16.mxu0 0
        %389 = vmatpush1.bf16.msra.mxu0 0
        %390 = vmatprep.subr.bf16.mxu0 0
        %391 = vmatpush1.bf16.msra.mxu0 0
        %392 = vmatprep.subr.bf16.mxu0 0
        %393 = vmatpush1.bf16.msra.mxu0 0
        %394 = vmatprep.subr.bf16.mxu0 0
        %395 = vmatpush1.bf16.msra.mxu0 0
        %396 = vmatprep.subr.bf16.mxu0 0
        %397 = vmatpush1.bf16.msra.mxu0 0
        %398 = vmatprep.subr.bf16.mxu0 0
        %399 = vmatpush1.bf16.msra.mxu0 0
        %400 = vmatprep.subr.bf16.mxu0 0
        %401 = vmatpush1.bf16.msra.mxu0 0
        %402 = vmatprep.subr.bf16.mxu0 0
        %403 = vmatpush1.bf16.msra.mxu0 0
        %404 = vmatprep.mubr.bf16.mxu0 0
        %405 = vmatmul.mubr.bf16.gmra.mrb[0].mxu0 %v363
        %v406 = vpop.f32.mrb[0].mxu0
        %v407 = vadd.f32 0.0, %v406
        %v408 = vpop.f32.mrb[0].mxu0
        %v409 = vpop.f32.mrb[0].mxu0
        %v410 = vadd.f32 0.0, %v409
        %v411 = vpop.f32.mrb[0].mxu0
        %412 = vdwg.mxu0
        %v413 = vsel %vm361, %v346, 0
        %v416 = vand.u32 %v336, %v368
        %418 = vmatprep.subr.bf16.mxu0 0
        %419 = vmatpush1.bf16.msra.mxu0 %v416
        %420 = vmatprep.subr.bf16.mxu0 0
        %421 = vmatpush1.bf16.msra.mxu0 0
        %422 = vmatprep.subr.bf16.mxu0 0
        %423 = vmatpush1.bf16.msra.mxu0 0
        %424 = vmatprep.subr.bf16.mxu0 0
        %425 = vmatpush1.bf16.msra.mxu0 0
        %426 = vmatprep.subr.bf16.mxu0 0
        %427 = vmatpush1.bf16.msra.mxu0 0
        %428 = vmatprep.subr.bf16.mxu0 0
        %429 = vmatpush1.bf16.msra.mxu0 0
        %430 = vmatprep.subr.bf16.mxu0 0
        %431 = vmatpush1.bf16.msra.mxu0 0
        %432 = vmatprep.subr.bf16.mxu0 0
        %433 = vmatpush1.bf16.msra.mxu0 0
        %434 = vmatprep.subr.bf16.mxu0 0
        %435 = vmatpush1.bf16.msra.mxu0 0
        %436 = vmatprep.subr.bf16.mxu0 0
        %437 = vmatpush1.bf16.msra.mxu0 0
        %438 = vmatprep.subr.bf16.mxu0 0
        %439 = vmatpush1.bf16.msra.mxu0 0
        %440 = vmatprep.subr.bf16.mxu0 0
        %441 = vmatpush1.bf16.msra.mxu0 0
        %442 = vmatprep.subr.bf16.mxu0 0
        %443 = vmatpush1.bf16.msra.mxu0 0
        %444 = vmatprep.subr.bf16.mxu0 0
        %445 = vmatpush1.bf16.msra.mxu0 0
        %446 = vmatprep.subr.bf16.mxu0 0
        %447 = vmatpush1.bf16.msra.mxu0 0
        %448 = vmatprep.subr.bf16.mxu0 0
        %449 = vmatpush1.bf16.msra.mxu0 0
        %450 = vmatprep.mubr.bf16.mxu0 0
        %451 = vmatmul.mubr.bf16.gmra.mrb[0].mxu0 %v413
        %v452 = vpop.f32.mrb[0].mxu0
        %v453 = vadd.f32 %v407, %v452
        %v454 = vpop.f32.mrb[0].mxu0
        %v455 = vpop.f32.mrb[0].mxu0
        %v456 = vadd.f32 %v410, %v455
        %v457 = vpop.f32.mrb[0].mxu0
        %458 = vdwg.mxu0
        %v459 = vld [vmem:[%s310] sm:$0xe]
        %s460 = scalar_lea.vmem %s3, 4
        %v461 = vld [vmem:[%s460] sm:$0x3]
        %v463 = vunpack.c.l.b16 %v459
        %v464 = vpack.c.b16 %v344, %v463
        %vm465 = vcmask 1046528
        %v466 = vrot.slane %v464, 1
        %v467 = vrot.slane %v347, 1
        %v468 = vsel %vm465, %v466, %v467
        %v470 = vsel %vm361, %v468, 0
        %v473 = vand.u32 %v461, %v368
        %475 = vmatprep.subr.bf16.mxu0 0
        %476 = vmatpush1.bf16.msra.mxu0 %v473
        %477 = vmatprep.subr.bf16.mxu0 0
        %478 = vmatpush1.bf16.msra.mxu0 0
        %479 = vmatprep.subr.bf16.mxu0 0
        %480 = vmatpush1.bf16.msra.mxu0 0
        %481 = vmatprep.subr.bf16.mxu0 0
        %482 = vmatpush1.bf16.msra.mxu0 0
        %483 = vmatprep.subr.bf16.mxu0 0
        %484 = vmatpush1.bf16.msra.mxu0 0
        %485 = vmatprep.subr.bf16.mxu0 0
        %486 = vmatpush1.bf16.msra.mxu0 0
        %487 = vmatprep.subr.bf16.mxu0 0
        %488 = vmatpush1.bf16.msra.mxu0 0
        %489 = vmatprep.subr.bf16.mxu0 0
        %490 = vmatpush1.bf16.msra.mxu0 0
        %491 = vmatprep.subr.bf16.mxu0 0
        %492 = vmatpush1.bf16.msra.mxu0 0
        %493 = vmatprep.subr.bf16.mxu0 0
        %494 = vmatpush1.bf16.msra.mxu0 0
        %495 = vmatprep.subr.bf16.mxu0 0
        %496 = vmatpush1.bf16.msra.mxu0 0
        %497 = vmatprep.subr.bf16.mxu0 0
        %498 = vmatpush1.bf16.msra.mxu0 0
        %499 = vmatprep.subr.bf16.mxu0 0
        %500 = vmatpush1.bf16.msra.mxu0 0
        %501 = vmatprep.subr.bf16.mxu0 0
        %502 = vmatpush1.bf16.msra.mxu0 0
        %503 = vmatprep.subr.bf16.mxu0 0
        %504 = vmatpush1.bf16.msra.mxu0 0
        %505 = vmatprep.subr.bf16.mxu0 0
        %506 = vmatpush1.bf16.msra.mxu0 0
        %507 = vmatprep.mubr.bf16.mxu0 0
        %508 = vmatmul.mubr.bf16.gmra.mrb[0].mxu0 %v470
        %v509 = vpop.f32.mrb[0].mxu0
        %v510 = vadd.f32 0.0, %v509
        %v511 = vpop.f32.mrb[0].mxu0
        %v512 = vpop.f32.mrb[0].mxu0
        %v513 = vadd.f32 0.0, %v512
        %v514 = vpop.f32.mrb[0].mxu0
        %515 = vdwg.mxu0
        %v516 = vadd.f32 %v453, %v510
        %v517 = vadd.f32 %v456, %v513
        %v518 = vld [vmem:[%s320] sm:$0xf]
        %v519 = vld [vmem:[%s320 + $0x4] sm:$0xf]
        %s520 = scalar_lea.vmem %s3, 6
        %v521 = vld [vmem:[%s520] sm:$0x3]
        %v524 = vunpack.c.l.b16 %v518
        %v525 = vunpack.c.l.b16 %v519
        %v526 = vpack.c.b16 %v525, %v524
        %v528 = vsel %vm361, %v526, 0
        %v531 = vand.u32 %v521, %v368
        %533 = vmatprep.subr.bf16.mxu0 0
        %534 = vmatpush1.bf16.msra.mxu0 %v531
        %535 = vmatprep.subr.bf16.mxu0 0
        %536 = vmatpush1.bf16.msra.mxu0 0
        %537 = vmatprep.subr.bf16.mxu0 0
        %538 = vmatpush1.bf16.msra.mxu0 0
        %539 = vmatprep.subr.bf16.mxu0 0
        %540 = vmatpush1.bf16.msra.mxu0 0
        %541 = vmatprep.subr.bf16.mxu0 0
        %542 = vmatpush1.bf16.msra.mxu0 0
        %543 = vmatprep.subr.bf16.mxu0 0
        %544 = vmatpush1.bf16.msra.mxu0 0
        %545 = vmatprep.subr.bf16.mxu0 0
        %546 = vmatpush1.bf16.msra.mxu0 0
        %547 = vmatprep.subr.bf16.mxu0 0
        %548 = vmatpush1.bf16.msra.mxu0 0
        %549 = vmatprep.subr.bf16.mxu0 0
        %550 = vmatpush1.bf16.msra.mxu0 0
        %551 = vmatprep.subr.bf16.mxu0 0
        %552 = vmatpush1.bf16.msra.mxu0 0
        %553 = vmatprep.subr.bf16.mxu0 0
        %554 = vmatpush1.bf16.msra.mxu0 0
        %555 = vmatprep.subr.bf16.mxu0 0
        %556 = vmatpush1.bf16.msra.mxu0 0
        %557 = vmatprep.subr.bf16.mxu0 0
        %558 = vmatpush1.bf16.msra.mxu0 0
        %559 = vmatprep.subr.bf16.mxu0 0
        %560 = vmatpush1.bf16.msra.mxu0 0
        %561 = vmatprep.subr.bf16.mxu0 0
        %562 = vmatpush1.bf16.msra.mxu0 0
        %563 = vmatprep.subr.bf16.mxu0 0
        %564 = vmatpush1.bf16.msra.mxu0 0
        %565 = vmatprep.mubr.bf16.mxu0 0
        %566 = vmatmul.mubr.bf16.gmra.mrb[0].mxu0 %v528
        %v567 = vpop.f32.mrb[0].mxu0
        %v568 = vadd.f32 0.0, %v567
        %v569 = vpop.f32.mrb[0].mxu0
        %v570 = vpop.f32.mrb[0].mxu0
        %v571 = vadd.f32 0.0, %v570
        %v572 = vpop.f32.mrb[0].mxu0
        %573 = vdwg.mxu0
        %v574 = vadd.f32 %v516, %v568
        %v575 = vadd.f32 %v517, %v571
        %v576 = vld [vmem:[%s320] sm:$0xf]
        %v577 = vld [vmem:[%s320 + $0x4] sm:$0xf]
        %v578 = vld [vmem:[%s320 + $0x8] sm:$0x1]
        %s579 = scalar_lea.vmem %s3, 8
        %v580 = vld [vmem:[%s579] sm:$0x3]
        %v584 = vunpack.c.l.b16 %v576
        %v585 = vunpack.c.l.b16 %v577
        %v586 = vunpack.c.l.b16 %v578
        %v587 = vpack.c.b16 %v585, %v584
        %v588 = vpack.c.b16 %v586, %v586
        %v590 = vshrl.u32 %v587, 16
        %v592 = vshll.u32 %v587, 16
        %v594 = vrot.slane %v592, 1
        %v595 = vor.u32 %v590, %v594
        %v597 = vshll.u32 %v588, 16
        %v599 = vrot.slane %v597, 1
        %v600 = vsel %vm348, %v595, %v599
        %v602 = vsel %vm361, %v600, 0
        %v605 = vand.u32 %v580, %v368
        %607 = vmatprep.subr.bf16.mxu0 0
        %608 = vmatpush1.bf16.msra.mxu0 %v605
        %609 = vmatprep.subr.bf16.mxu0 0
        %610 = vmatpush1.bf16.msra.mxu0 0
        %611 = vmatprep.subr.bf16.mxu0 0
        %612 = vmatpush1.bf16.msra.mxu0 0
        %613 = vmatprep.subr.bf16.mxu0 0
        %614 = vmatpush1.bf16.msra.mxu0 0
        %615 = vmatprep.subr.bf16.mxu0 0
        %616 = vmatpush1.bf16.msra.mxu0 0
        %617 = vmatprep.subr.bf16.mxu0 0
        %618 = vmatpush1.bf16.msra.mxu0 0
        %619 = vmatprep.subr.bf16.mxu0 0
        %620 = vmatpush1.bf16.msra.mxu0 0
        %621 = vmatprep.subr.bf16.mxu0 0
        %622 = vmatpush1.bf16.msra.mxu0 0
        %623 = vmatprep.subr.bf16.mxu0 0
        %624 = vmatpush1.bf16.msra.mxu0 0
        %625 = vmatprep.subr.bf16.mxu0 0
        %626 = vmatpush1.bf16.msra.mxu0 0
        %627 = vmatprep.subr.bf16.mxu0 0
        %628 = vmatpush1.bf16.msra.mxu0 0
        %629 = vmatprep.subr.bf16.mxu0 0
        %630 = vmatpush1.bf16.msra.mxu0 0
        %631 = vmatprep.subr.bf16.mxu0 0
        %632 = vmatpush1.bf16.msra.mxu0 0
        %633 = vmatprep.subr.bf16.mxu0 0
        %634 = vmatpush1.bf16.msra.mxu0 0
        %635 = vmatprep.subr.bf16.mxu0 0
        %636 = vmatpush1.bf16.msra.mxu0 0
        %637 = vmatprep.subr.bf16.mxu0 0
        %638 = vmatpush1.bf16.msra.mxu0 0
        %639 = vmatprep.mubr.bf16.mxu0 0
        %640 = vmatmul.mubr.bf16.gmra.mrb[0].mxu0 %v602
        %v641 = vpop.f32.mrb[0].mxu0
        %v642 = vadd.f32 0.0, %v641
        %v643 = vpop.f32.mrb[0].mxu0
        %v644 = vpop.f32.mrb[0].mxu0
        %v645 = vadd.f32 0.0, %v644
        %v646 = vpop.f32.mrb[0].mxu0
        %647 = vdwg.mxu0
        %v648 = vadd.f32 %v574, %v642
        %v649 = vadd.f32 %v575, %v645
        %v650 = vld [vmem:[%s320] sm:$0xe]
        %s651 = scalar_lea.vmem %s3, 10
        %v652 = vld [vmem:[%s651] sm:$0x3]
        %v654 = vunpack.c.l.b16 %v650
        %v655 = vpack.c.b16 %v585, %v654
        %v656 = vrot.slane %v655, 1
        %v657 = vrot.slane %v588, 1
        %v658 = vsel %vm465, %v656, %v657
        %v660 = vsel %vm361, %v658, 0
        %v663 = vand.u32 %v652, %v368
        %665 = vmatprep.subr.bf16.mxu0 0
        %666 = vmatpush1.bf16.msra.mxu0 %v663
        %667 = vmatprep.subr.bf16.mxu0 0
        %668 = vmatpush1.bf16.msra.mxu0 0
        %669 = vmatprep.subr.bf16.mxu0 0
        %670 = vmatpush1.bf16.msra.mxu0 0
        %671 = vmatprep.subr.bf16.mxu0 0
        %672 = vmatpush1.bf16.msra.mxu0 0
        %673 = vmatprep.subr.bf16.mxu0 0
        %674 = vmatpush1.bf16.msra.mxu0 0
        %675 = vmatprep.subr.bf16.mxu0 0
        %676 = vmatpush1.bf16.msra.mxu0 0
        %677 = vmatprep.subr.bf16.mxu0 0
        %678 = vmatpush1.bf16.msra.mxu0 0
        %679 = vmatprep.subr.bf16.mxu0 0
        %680 = vmatpush1.bf16.msra.mxu0 0
        %681 = vmatprep.subr.bf16.mxu0 0
        %682 = vmatpush1.bf16.msra.mxu0 0
        %683 = vmatprep.subr.bf16.mxu0 0
        %684 = vmatpush1.bf16.msra.mxu0 0
        %685 = vmatprep.subr.bf16.mxu0 0
        %686 = vmatpush1.bf16.msra.mxu0 0
        %687 = vmatprep.subr.bf16.mxu0 0
        %688 = vmatpush1.bf16.msra.mxu0 0
        %689 = vmatprep.subr.bf16.mxu0 0
        %690 = vmatpush1.bf16.msra.mxu0 0
        %691 = vmatprep.subr.bf16.mxu0 0
        %692 = vmatpush1.bf16.msra.mxu0 0
        %693 = vmatprep.subr.bf16.mxu0 0
        %694 = vmatpush1.bf16.msra.mxu0 0
        %695 = vmatprep.subr.bf16.mxu0 0
        %696 = vmatpush1.bf16.msra.mxu0 0
        %697 = vmatprep.mubr.bf16.mxu0 0
        %698 = vmatmul.mubr.bf16.gmra.mrb[0].mxu0 %v660
        %v699 = vpop.f32.mrb[0].mxu0
        %v700 = vadd.f32 0.0, %v699
        %v701 = vpop.f32.mrb[0].mxu0
        %v702 = vpop.f32.mrb[0].mxu0
        %v703 = vadd.f32 0.0, %v702
        %v704 = vpop.f32.mrb[0].mxu0
        %705 = vdwg.mxu0
        %v706 = vadd.f32 %v648, %v700
        %v707 = vadd.f32 %v649, %v703
        %v708 = vld [vmem:[%s331] sm:$0xf]
        %v709 = vld [vmem:[%s331 + $0x4] sm:$0xf]
        %s710 = scalar_lea.vmem %s3, 12
        %v711 = vld [vmem:[%s710] sm:$0x3]
        %v714 = vunpack.c.l.b16 %v708
        %v715 = vunpack.c.l.b16 %v709
        %v716 = vpack.c.b16 %v715, %v714
        %v718 = vsel %vm361, %v716, 0
        %v721 = vand.u32 %v711, %v368
        %723 = vmatprep.subr.bf16.mxu0 0
        %724 = vmatpush1.bf16.msra.mxu0 %v721
        %725 = vmatprep.subr.bf16.mxu0 0
        %726 = vmatpush1.bf16.msra.mxu0 0
        %727 = vmatprep.subr.bf16.mxu0 0
        %728 = vmatpush1.bf16.msra.mxu0 0
        %729 = vmatprep.subr.bf16.mxu0 0
        %730 = vmatpush1.bf16.msra.mxu0 0
        %731 = vmatprep.subr.bf16.mxu0 0
        %732 = vmatpush1.bf16.msra.mxu0 0
        %733 = vmatprep.subr.bf16.mxu0 0
        %734 = vmatpush1.bf16.msra.mxu0 0
        %735 = vmatprep.subr.bf16.mxu0 0
        %736 = vmatpush1.bf16.msra.mxu0 0
        %737 = vmatprep.subr.bf16.mxu0 0
        %738 = vmatpush1.bf16.msra.mxu0 0
        %739 = vmatprep.subr.bf16.mxu0 0
        %740 = vmatpush1.bf16.msra.mxu0 0
        %741 = vmatprep.subr.bf16.mxu0 0
        %742 = vmatpush1.bf16.msra.mxu0 0
        %743 = vmatprep.subr.bf16.mxu0 0
        %744 = vmatpush1.bf16.msra.mxu0 0
        %745 = vmatprep.subr.bf16.mxu0 0
        %746 = vmatpush1.bf16.msra.mxu0 0
        %747 = vmatprep.subr.bf16.mxu0 0
        %748 = vmatpush1.bf16.msra.mxu0 0
        %749 = vmatprep.subr.bf16.mxu0 0
        %750 = vmatpush1.bf16.msra.mxu0 0
        %751 = vmatprep.subr.bf16.mxu0 0
        %752 = vmatpush1.bf16.msra.mxu0 0
        %753 = vmatprep.subr.bf16.mxu0 0
        %754 = vmatpush1.bf16.msra.mxu0 0
        %755 = vmatprep.mubr.bf16.mxu0 0
        %756 = vmatmul.mubr.bf16.gmra.mrb[0].mxu0 %v718
        %v757 = vpop.f32.mrb[0].mxu0
        %v758 = vadd.f32 0.0, %v757
        %v759 = vpop.f32.mrb[0].mxu0
        %v760 = vpop.f32.mrb[0].mxu0
        %v761 = vadd.f32 0.0, %v760
        %v762 = vpop.f32.mrb[0].mxu0
        %763 = vdwg.mxu0
        %v764 = vadd.f32 %v706, %v758
        %v765 = vadd.f32 %v707, %v761
        %v766 = vld [vmem:[%s331] sm:$0xf]
        %v767 = vld [vmem:[%s331 + $0x4] sm:$0xf]
        %v768 = vld [vmem:[%s331 + $0x8] sm:$0x1]
        %s769 = scalar_lea.vmem %s3, 14
        %v770 = vld [vmem:[%s769] sm:$0x3]
        %v774 = vunpack.c.l.b16 %v766
        %v775 = vunpack.c.l.b16 %v767
        %v776 = vunpack.c.l.b16 %v768
        %v777 = vpack.c.b16 %v775, %v774
        %v778 = vpack.c.b16 %v776, %v776
        %v780 = vshrl.u32 %v777, 16
        %v782 = vshll.u32 %v777, 16
        %v784 = vrot.slane %v782, 1
        %v785 = vor.u32 %v780, %v784
        %v787 = vshll.u32 %v778, 16
        %v789 = vrot.slane %v787, 1
        %v790 = vsel %vm348, %v785, %v789
        %v792 = vsel %vm361, %v790, 0
        %v795 = vand.u32 %v770, %v368
        %797 = vmatprep.subr.bf16.mxu0 0
        %798 = vmatpush1.bf16.msra.mxu0 %v795
        %799 = vmatprep.subr.bf16.mxu0 0
        %800 = vmatpush1.bf16.msra.mxu0 0
        %801 = vmatprep.subr.bf16.mxu0 0
        %802 = vmatpush1.bf16.msra.mxu0 0
        %803 = vmatprep.subr.bf16.mxu0 0
        %804 = vmatpush1.bf16.msra.mxu0 0
        %805 = vmatprep.subr.bf16.mxu0 0
        %806 = vmatpush1.bf16.msra.mxu0 0
        %807 = vmatprep.subr.bf16.mxu0 0
        %808 = vmatpush1.bf16.msra.mxu0 0
        %809 = vmatprep.subr.bf16.mxu0 0
        %810 = vmatpush1.bf16.msra.mxu0 0
        %811 = vmatprep.subr.bf16.mxu0 0
        %812 = vmatpush1.bf16.msra.mxu0 0
        %813 = vmatprep.subr.bf16.mxu0 0
        %814 = vmatpush1.bf16.msra.mxu0 0
        %815 = vmatprep.subr.bf16.mxu0 0
        %816 = vmatpush1.bf16.msra.mxu0 0
        %817 = vmatprep.subr.bf16.mxu0 0
        %818 = vmatpush1.bf16.msra.mxu0 0
        %819 = vmatprep.subr.bf16.mxu0 0
        %820 = vmatpush1.bf16.msra.mxu0 0
        %821 = vmatprep.subr.bf16.mxu0 0
        %822 = vmatpush1.bf16.msra.mxu0 0
        %823 = vmatprep.subr.bf16.mxu0 0
        %824 = vmatpush1.bf16.msra.mxu0 0
        %825 = vmatprep.subr.bf16.mxu0 0
        %826 = vmatpush1.bf16.msra.mxu0 0
        %827 = vmatprep.subr.bf16.mxu0 0
        %828 = vmatpush1.bf16.msra.mxu0 0
        %829 = vmatprep.mubr.bf16.mxu0 0
        %830 = vmatmul.mubr.bf16.gmra.mrb[0].mxu0 %v792
        %v831 = vpop.f32.mrb[0].mxu0
        %v832 = vadd.f32 0.0, %v831
        %v833 = vpop.f32.mrb[0].mxu0
        %v834 = vpop.f32.mrb[0].mxu0
        %v835 = vadd.f32 0.0, %v834
        %v836 = vpop.f32.mrb[0].mxu0
        %837 = vdwg.mxu0
        %v838 = vadd.f32 %v764, %v832
        %v839 = vadd.f32 %v765, %v835
        %v840 = vld [vmem:[%s331] sm:$0xe]
        %s841 = scalar_lea.vmem %s3, 16
        %v842 = vld [vmem:[%s841] sm:$0x3]
        %v844 = vunpack.c.l.b16 %v840
        %v845 = vpack.c.b16 %v775, %v844
        %v846 = vrot.slane %v845, 1
        %v847 = vrot.slane %v778, 1
        %v848 = vsel %vm465, %v846, %v847
        %v850 = vsel %vm361, %v848, 0
        %v853 = vand.u32 %v842, %v368
        %855 = vmatprep.subr.bf16.mxu0 0
        %856 = vmatpush1.bf16.msra.mxu0 %v853
        %857 = vmatprep.subr.bf16.mxu0 0
        %858 = vmatpush1.bf16.msra.mxu0 0
        %859 = vmatprep.subr.bf16.mxu0 0
        %860 = vmatpush1.bf16.msra.mxu0 0
        %861 = vmatprep.subr.bf16.mxu0 0
        %862 = vmatpush1.bf16.msra.mxu0 0
        %863 = vmatprep.subr.bf16.mxu0 0
        %864 = vmatpush1.bf16.msra.mxu0 0
        %865 = vmatprep.subr.bf16.mxu0 0
        %866 = vmatpush1.bf16.msra.mxu0 0
        %867 = vmatprep.subr.bf16.mxu0 0
        %868 = vmatpush1.bf16.msra.mxu0 0
        %869 = vmatprep.subr.bf16.mxu0 0
        %870 = vmatpush1.bf16.msra.mxu0 0
        %871 = vmatprep.subr.bf16.mxu0 0
        %872 = vmatpush1.bf16.msra.mxu0 0
        %873 = vmatprep.subr.bf16.mxu0 0
        %874 = vmatpush1.bf16.msra.mxu0 0
        %875 = vmatprep.subr.bf16.mxu0 0
        %876 = vmatpush1.bf16.msra.mxu0 0
        %877 = vmatprep.subr.bf16.mxu0 0
        %878 = vmatpush1.bf16.msra.mxu0 0
        %879 = vmatprep.subr.bf16.mxu0 0
        %880 = vmatpush1.bf16.msra.mxu0 0
        %881 = vmatprep.subr.bf16.mxu0 0
        %882 = vmatpush1.bf16.msra.mxu0 0
        %883 = vmatprep.subr.bf16.mxu0 0
        %884 = vmatpush1.bf16.msra.mxu0 0
        %885 = vmatprep.subr.bf16.mxu0 0
        %886 = vmatpush1.bf16.msra.mxu0 0
        %887 = vmatprep.mubr.bf16.mxu0 0
        %888 = vmatmul.mubr.bf16.gmra.mrb[0].mxu0 %v850
        %v889 = vpop.f32.mrb[0].mxu0
        %v890 = vadd.f32 0.0, %v889
        %v891 = vpop.f32.mrb[0].mxu0
        %v892 = vpop.f32.mrb[0].mxu0
        %v893 = vadd.f32 0.0, %v892
        %v894 = vpop.f32.mrb[0].mxu0
        %895 = vdwg.mxu0
        %v896 = vadd.f32 %v838, %v890
        %v897 = vadd.f32 %v839, %v893
        %v898 = vld [vmem:[%s4] sm:$0x1]
        %v900 = vlaneseq
        %v901 = vshrl.u32 %v900, 7
        %v902 = vsub.s32 0, %v901
        %v903 = vrot.slane %v898, %v902
        %v905 = vadd.f32 %v896, %v903
        %v906 = vadd.f32 %v897, %v903
        %v907 = vmax.f32 %v905, 0.0
        %v908 = vmax.f32 %v906, 0.0
        %v909 = vpack.c.bf16 %v908, %v907
        %v911 = vunpack.c.l.b16 %v909
        %v912 = vunpack.c.h.b16 %v909
        %v913 = vpack.c.b16 %v911, %v911
        %v914 = vpack.c.b16 %v912, %v912
        %917 = vst [vmem:[%s301] sm:$0xf] %v913
        %918 = vst [vmem:[%s301 + $0x4] sm:$0xf] %v914
        %s919 = sand.u32 %s171, 1
        %s920 = scalar_lea.sflag [#allocation3], %s919
        %s921 = sand.u32 %s171, 1
        %s922 = smul.addr %s921, 8
        %s923 = scalar_lea.vmem [#allocation2], %s922
        // Predicated region
        $region41: #{tpu_custom_call.1} parent=39 // pred_check
          %p924 = pneg %p181
        $region42: #{tpu_custom_call.1} parent=39 // pred_check_branch
          %926 = sbr.rel (%p924) target = $region44
        $region43: #{tpu_custom_call.1} parent=39 // pred_region
          %s928 = ssub.s32 128, 128
          %929 = vsyncadd %s920, %s928
          %s930 = smul.addr %s24, 2
          %s931 = smul.addr %s23, 32
          %s932 = sadd.s32 %s930, %s931
          %s933 = smul.addr %s932, 64
          %s934 = scalar_lea.hbm %s5, %s933
          %s935 = sshll.u32 %s923, 4
          %s936 = int_to_ptr.vmem [resolvable:$true] %s935
          %941 = dma.vmem_to_hbm [thread:$0]  %s936, 128, %s934, %s920, 64, 64, 4
        $region44: #{tpu_custom_call.1} parent=39 // pred_fallthru
          _
      $region40: #{tpu_custom_call.1} parent=5 // pred_fallthru
        _
      %p942 = scmp.le.s32.totalorder 2, %s14
      // Predicated region
      $region45: #{tpu_custom_call.1} parent=5 // pred_check
        %p943 = pneg %p942
      $region46: #{tpu_custom_call.1} parent=5 // pred_check_branch
        %945 = sbr.rel (%p943) target = $region48
      $region47: #{tpu_custom_call.1} parent=5 // pred_region
        %s946 = ssub.s32 %s14, 2
        // Predicated region
        $region49: #{tpu_custom_call.1} parent=47 // pred_check
          %p947 = pneg %p187
        $region50: #{tpu_custom_call.1} parent=47 // pred_check_branch
          %949 = sbr.rel (%p947) target = $region52
        $region51: #{tpu_custom_call.1} parent=47 // pred_region
          %s950 = sand.u32 %s172, 1
          %s951 = scalar_lea.sflag [#allocation3], %s950
          %s952 = sand.u32 %s172, 1
          %s953 = smul.addr %s952, 8
          %s954 = scalar_lea.vmem [#allocation2], %s953
          %955 = dma.done %s951, 128
        $region52: #{tpu_custom_call.1} parent=47 // pred_fallthru
          _
      $region48: #{tpu_custom_call.1} parent=5 // pred_fallthru
        _
    $region6: #{tpu_custom_call.1} parent=1 // loop_footer
      %s18 = sadd.s32 1, %s14
    $region7: #{tpu_custom_call.1} parent=1 // loop_footer_branch
      %13 = sbr.rel target = $region3
    $region8: #{tpu_custom_call.1} parent=1 // loop_exit
      _
    %956 = vsyncpa [#allocation3], 1
    %s957 = scalar_lea.sflag [#allocation3], 1
    %958 = vsyncpa %s957, 1

</llo_original>
